<compile_context>
chip_gen: v5e
topology: v5e:2x2
jax: 0.10.0
libtpu: 0.0.40
codegen_flags: <defaults>
</compile_context>

<pallas_src>
import jax
import jax.numpy as jnp
import numpy as np
from jax import lax
from jax.experimental import pallas as pl
from jax.experimental.pallas import tpu as pltpu


def _baseline_kernel(a_ref, wd_ref, o_ref):
    """a_ref, wd_ref, o_ref: (tb, ns) VMEM tiles; time is the lane axis."""
    a = a_ref[...]                                    # (tb, ns) values
    wet = wd_ref[...] != 0                            # truthy -> wet (hold prev)
    ns = a.shape[1]

    # carry[n] == 1  <=>  position n still needs the value from its left.
    # Position 0 never carries: baseline[0] = attenuation[0] regardless of wd[0].
    t_idx = lax.broadcasted_iota(jnp.int32, a.shape, dimension=1)
    carry = jnp.logical_and(wet, t_idx > 0).astype(jnp.int32)

    # Hillis-Steele log-depth "last-value-carry-forward" scan along lanes.
    #   combine((v_r, c_r), (v_l, c_l)) = (c_r ? v_l : v_r, c_r & c_l)
    # is associative.  Circular wraparound of the roll is harmless: any
    # position n < d already has carry == 0 (its prefix reaches t=0), so the
    # wrapped-in garbage is never selected.
    shifts = []
    d = 1
    while d < ns:
        shifts.append(d)
        d *= 2

    v = a
    for d in shifts[:-1]:
        v_sh = pltpu.roll(v, shift=d, axis=1)         # v[n-d]    (XLU lane rotate)
        c_sh = pltpu.roll(carry, shift=d, axis=1)     # carry[n-d]
        v = jnp.where(carry != 0, v_sh, v)            # still carrying -> look back
        carry = carry * c_sh                          # logical AND on {0,1}
    if shifts:
        # Peeled final step: the carry roll / carry update would be dead code.
        d = shifts[-1]
        v_sh = pltpu.roll(v, shift=d, axis=1)
        v = jnp.where(carry != 0, v_sh, v)

    o_ref[...] = v


def _choose_batch_tile(nb: int, ns_pad: int, value_itemsize: int) -> int:
    """Pick the batch tile (rows per grid step)."""
    # ~2 MiB value block: measured f32 pipelines on v6e reach ~85% of the HBM
    # roofline at >=1 MiB tiles, and the ~0.35 us per-grid-step overhead is
    # amortized.  Rows must be a multiple of 8 (sublane rule) unless the tile
    # covers the full batch.
    budget_bytes = 2 << 20
    row_bytes = max(ns_pad * max(value_itemsize, 4), 1)   # scan temps are 32-bit
    tb = budget_bytes // row_bytes
    tb = max(8, (tb // 8) * 8)
    # Keep >= 2 grid blocks when the batch allows it so
    # dimension_semantics=("parallel",) shards across v7x's two TensorCores.
    if nb >= 16:
        half = -(-nb // 2)                 # cdiv(nb, 2)
        half = -(-half // 8) * 8           # round up to a multiple of 8
        tb = min(tb, half)
    return nb if tb >= nb else tb


def constant_baseline(input_attenuation: jnp.ndarray,
                      input_wet_dry: jnp.ndarray) -> jnp.ndarray:
    """input_attenuation (N_b, N_s), input_wet_dry (N_b, N_s) -> baseline (N_b, N_s).

    wet_dry is interpreted via `!= 0` (Python truthiness of the reference); it
    may be bool / int8 / float -- narrow dtypes save HBM bandwidth.
    The output dtype follows input_attenuation's dtype.
    """
    nb, ns = input_attenuation.shape
    assert input_wet_dry.shape == (nb, ns)

    # Lane-dense time axis: pad ns up to a multiple of 128 with "dry" columns
    # so stores are unmasked vst and rolls stay lane-aligned.  Correctness is
    # preserved because padded columns have wd == 0 (carry == 0); they are
    # sliced off below.
    ns_pad = ns
    if ns > 128 and ns % 128 != 0:
        ns_pad = ((ns + 127) // 128) * 128
        pad = ns_pad - ns
        input_attenuation = jnp.pad(input_attenuation, ((0, 0), (0, pad)))
        input_wet_dry = jnp.pad(input_wet_dry, ((0, 0), (0, pad)))

    a_itemsize = jnp.dtype(input_attenuation.dtype).itemsize
    wd_itemsize = jnp.dtype(input_wet_dry.dtype).itemsize
    tb = _choose_batch_tile(nb, ns_pad, a_itemsize)
    grid = (pl.cdiv(nb, tb),)

    # VMEM budget: 3 arrays x 2 pipeline buffers + ~4 live full-tile scan
    # temporaries (v, carry, v_sh, c_sh), with headroom; capped at 48 MiB to
    # stay well under v7x's 64 MiB physical VMEM.
    value_block_bytes = tb * ns_pad * max(a_itemsize, 4)
    wd_block_bytes = tb * ns_pad * wd_itemsize
    vmem_limit = int(min(48 << 20,
                         max(32 << 20, 10 * value_block_bytes + 4 * wd_block_bytes)))

    # TODO(synk): for ns >> 128 on v7x, use a two-level scan (in-vreg 128-lane
    # chunk scans + a tiny cross-chunk carry combine) to bound XLU roll cost.
    # TODO(synk): for nb < 8 with very long time series, fold time chunks into
    # the sublane dimension (or add an "arbitrary" time grid axis with a
    # carried (tb,1) scratch) to restore full vreg occupancy.
    out = pl.pallas_call(
        _baseline_kernel,
        out_shape=jax.ShapeDtypeStruct((nb, ns_pad), input_attenuation.dtype),
        grid=grid,
        in_specs=[pl.BlockSpec((tb, ns_pad), lambda i: (i, 0)),
                  pl.BlockSpec((tb, ns_pad), lambda i: (i, 0))],
        out_specs=pl.BlockSpec((tb, ns_pad), lambda i: (i, 0)),
        compiler_params=pltpu.CompilerParams(
            dimension_semantics=("parallel",),
            vmem_limit_bytes=vmem_limit),
    )(input_attenuation, input_wet_dry)

    if ns_pad != ns:
        out = out[:, :ns]
    return out


def _reference(a: np.ndarray, wd: np.ndarray) -> np.ndarray:
    nb, ns = a.shape
    out = np.zeros((nb, ns), np.float32)
    for b in range(nb):
        out[b, 0] = a[b, 0]
        for i in range(1, ns):
            out[b, i] = out[b, i - 1] if wd[b, i] else a[b, i]
    return out


if __name__ == "__main__":
    key = jax.random.PRNGKey(0)
    k_a, k_wd = jax.random.split(key)

    # Small, lane-dense example: batch on sublanes, one full vreg of time lanes.
    N_b, N_s = 8, 128
    attenuation = jax.random.uniform(k_a, (N_b, N_s), dtype=jnp.float32) * 10.0
    # wet/dry indicator kept narrow (int8): the kernel only tests != 0.
    wet_dry = jax.random.bernoulli(k_wd, p=0.5, shape=(N_b, N_s)).astype(jnp.int8)

    out = constant_baseline(attenuation, wet_dry)
    out = jax.block_until_ready(out)

    ref = _reference(np.asarray(attenuation), np.asarray(wet_dry))
    np.testing.assert_allclose(np.asarray(out), ref, rtol=1e-6, atol=1e-6)

    print("KERNEL_OK")
</pallas_src>

<mosaic_0001>
module attributes {stable_mosaic.version = 11 : i64} {
  func.func @_baseline_kernel(%arg0: i32, %arg1: memref<8x128xf32, #tpu.memory_space<vmem>>, %arg2: memref<8x128xi8, #tpu.memory_space<vmem>>, %arg3: memref<8x128xf32, #tpu.memory_space<vmem>>) attributes {dimension_semantics = [#tpu.dimension_semantics<parallel>], iteration_bounds = array<i64: 1>, scalar_prefetch = 0 : i64, scratch_operands = 0 : i64, tpu.core_type = #tpu.core_type<tc>, window_params = [{transform_indices = @transform_0, window_bounds = array<i64: 8, 128>}, {transform_indices = @transform_1, window_bounds = array<i64: 8, 128>}, {transform_indices = @transform_2, window_bounds = array<i64: 8, 128>}]} {
    %c0 = arith.constant 0 : index
    %c0_0 = arith.constant 0 : index
    %0 = vector.load %arg1[%c0, %c0_0] : memref<8x128xf32, #tpu.memory_space<vmem>>, vector<8x128xf32>
    %c0_1 = arith.constant 0 : index
    %c0_2 = arith.constant 0 : index
    %1 = vector.load %arg2[%c0_1, %c0_2] : memref<8x128xi8, #tpu.memory_space<vmem>>, vector<8x128xi8>
    %c0_i8 = arith.constant 0 : i8
    %2 = vector.broadcast %c0_i8 : i8 to vector<8x128xi8>
    %3 = arith.cmpi ne, %1, %2 : vector<8x128xi8>
    %4 = tpu.iota {dimensions = array<i32: 1>} : vector<8x128xi32>
    %c0_i32 = arith.constant 0 : i32
    %5 = vector.broadcast %c0_i32 : i32 to vector<8x128xi32>
    %6 = arith.cmpi sgt, %4, %5 : vector<8x128xi32>
    %7 = arith.andi %3, %6 : vector<8x128xi1>
    %8 = arith.extui %7 : vector<8x128xi1> to vector<8x128xi32>
    %c1_i32 = arith.constant 1 : i32
    %9 = tpu.dynamic_rotate %0 by %c1_i32 dim 1 : vector<8x128xf32>, i32 -> vector<8x128xf32>
    %c1_i32_3 = arith.constant 1 : i32
    %10 = tpu.dynamic_rotate %8 by %c1_i32_3 dim 1 : vector<8x128xi32>, i32 -> vector<8x128xi32>
    %c0_i32_4 = arith.constant 0 : i32
    %11 = vector.broadcast %c0_i32_4 : i32 to vector<8x128xi32>
    %12 = arith.cmpi ne, %8, %11 : vector<8x128xi32>
    %13 = arith.select %12, %9, %0 : vector<8x128xi1>, vector<8x128xf32>
    %14 = arith.muli %8, %10 : vector<8x128xi32>
    %c2_i32 = arith.constant 2 : i32
    %15 = tpu.dynamic_rotate %13 by %c2_i32 dim 1 : vector<8x128xf32>, i32 -> vector<8x128xf32>
    %c2_i32_5 = arith.constant 2 : i32
    %16 = tpu.dynamic_rotate %14 by %c2_i32_5 dim 1 : vector<8x128xi32>, i32 -> vector<8x128xi32>
    %c0_i32_6 = arith.constant 0 : i32
    %17 = vector.broadcast %c0_i32_6 : i32 to vector<8x128xi32>
    %18 = arith.cmpi ne, %14, %17 : vector<8x128xi32>
    %19 = arith.select %18, %15, %13 : vector<8x128xi1>, vector<8x128xf32>
    %20 = arith.muli %14, %16 : vector<8x128xi32>
    %c4_i32 = arith.constant 4 : i32
    %21 = tpu.dynamic_rotate %19 by %c4_i32 dim 1 : vector<8x128xf32>, i32 -> vector<8x128xf32>
    %c4_i32_7 = arith.constant 4 : i32
    %22 = tpu.dynamic_rotate %20 by %c4_i32_7 dim 1 : vector<8x128xi32>, i32 -> vector<8x128xi32>
    %c0_i32_8 = arith.constant 0 : i32
    %23 = vector.broadcast %c0_i32_8 : i32 to vector<8x128xi32>
    %24 = arith.cmpi ne, %20, %23 : vector<8x128xi32>
    %25 = arith.select %24, %21, %19 : vector<8x128xi1>, vector<8x128xf32>
    %26 = arith.muli %20, %22 : vector<8x128xi32>
    %c8_i32 = arith.constant 8 : i32
    %27 = tpu.dynamic_rotate %25 by %c8_i32 dim 1 : vector<8x128xf32>, i32 -> vector<8x128xf32>
    %c8_i32_9 = arith.constant 8 : i32
    %28 = tpu.dynamic_rotate %26 by %c8_i32_9 dim 1 : vector<8x128xi32>, i32 -> vector<8x128xi32>
    %c0_i32_10 = arith.constant 0 : i32
    %29 = vector.broadcast %c0_i32_10 : i32 to vector<8x128xi32>
    %30 = arith.cmpi ne, %26, %29 : vector<8x128xi32>
    %31 = arith.select %30, %27, %25 : vector<8x128xi1>, vector<8x128xf32>
    %32 = arith.muli %26, %28 : vector<8x128xi32>
    %c16_i32 = arith.constant 16 : i32
    %33 = tpu.dynamic_rotate %31 by %c16_i32 dim 1 : vector<8x128xf32>, i32 -> vector<8x128xf32>
    %c16_i32_11 = arith.constant 16 : i32
    %34 = tpu.dynamic_rotate %32 by %c16_i32_11 dim 1 : vector<8x128xi32>, i32 -> vector<8x128xi32>
    %c0_i32_12 = arith.constant 0 : i32
    %35 = vector.broadcast %c0_i32_12 : i32 to vector<8x128xi32>
    %36 = arith.cmpi ne, %32, %35 : vector<8x128xi32>
    %37 = arith.select %36, %33, %31 : vector<8x128xi1>, vector<8x128xf32>
    %38 = arith.muli %32, %34 : vector<8x128xi32>
    %c32_i32 = arith.constant 32 : i32
    %39 = tpu.dynamic_rotate %37 by %c32_i32 dim 1 : vector<8x128xf32>, i32 -> vector<8x128xf32>
    %c32_i32_13 = arith.constant 32 : i32
    %40 = tpu.dynamic_rotate %38 by %c32_i32_13 dim 1 : vector<8x128xi32>, i32 -> vector<8x128xi32>
    %c0_i32_14 = arith.constant 0 : i32
    %41 = vector.broadcast %c0_i32_14 : i32 to vector<8x128xi32>
    %42 = arith.cmpi ne, %38, %41 : vector<8x128xi32>
    %43 = arith.select %42, %39, %37 : vector<8x128xi1>, vector<8x128xf32>
    %44 = arith.muli %38, %40 : vector<8x128xi32>
    %c64_i32 = arith.constant 64 : i32
    %45 = tpu.dynamic_rotate %43 by %c64_i32 dim 1 : vector<8x128xf32>, i32 -> vector<8x128xf32>
    %c0_i32_15 = arith.constant 0 : i32
    %46 = vector.broadcast %c0_i32_15 : i32 to vector<8x128xi32>
    %47 = arith.cmpi ne, %44, %46 : vector<8x128xi32>
    %48 = arith.select %47, %45, %43 : vector<8x128xi1>, vector<8x128xf32>
    %c0_16 = arith.constant 0 : index
    %c0_17 = arith.constant 0 : index
    %49 = vector.load %arg3[%c0_16, %c0_17] : memref<8x128xf32, #tpu.memory_space<vmem>>, vector<8x128xf32>
    tpu.vector_store %arg3[%c0_16, %c0_17], %48 {strides = array<i32>} : memref<8x128xf32, #tpu.memory_space<vmem>>, vector<8x128xf32>,
    return
  }
  func.func @transform_0(%arg0: i32) -> (i32, i32) {
    %c0_i32 = arith.constant 0 : i32
    %c0_i32_0 = arith.constant 0 : i32
    return %arg0, %c0_i32 : i32, i32
  }
  func.func @transform_1(%arg0: i32) -> (i32, i32) {
    %c0_i32 = arith.constant 0 : i32
    %c0_i32_0 = arith.constant 0 : i32
    return %arg0, %c0_i32 : i32, i32
  }
  func.func @transform_2(%arg0: i32) -> (i32, i32) {
    %c0_i32 = arith.constant 0 : i32
    %c0_i32_0 = arith.constant 0 : i32
    return %arg0, %c0_i32 : i32, i32
  }
}

</mosaic_0001>

<llo_original>
// kernel: tpu_custom_call.1
$region0: #{tpu_custom_call.1}
  #allocation0 [shape = 'u32[]', space=smem, size = 0x4, offset = 0x4, fixed_abs, tag = 'smem constant byte address 0x4 - core index']
  #allocation1 [shape = 'u32[72,128]{1,0:T(1,128)}', space=vmem, size = 0x9000, scoped, tag = 'internal scratch']
  %s0 = inlined_call_operand.hbm [shape: f32[8,128], index: 0, kind: input, shape index: {}]
  %s1 = inlined_call_operand.hbm [shape: s8[8,128], index: 1, kind: input, shape index: {}]
  %s2 = inlined_call_operand.hbm [shape: f32[8,128], index: 2, kind: output, shape index: {}]
  %s3 = sld [smem:[#allocation0]]
  $region26: #{tpu_custom_call.1} parent=0
    _
  %s5 = ssub.s32 1, %s3
  %s6 = scalar_select 0, %s5, %s3
  $region1: #{tpu_custom_call.1} parent=0
    #allocation2 [shape = 'u8[4096]{0}', space=vmem, size = 0x1000, scoped, tag = 'input window, operand 0, single buffered']
    #allocation3 [shape = 's32[1]{0}', space=sflag, size = 0x4, scoped, tag = 'scoped memory for tpu_custom_call.1']
    #allocation4 [shape = 's32[1]{0}', space=sflag, size = 0x4, scoped, tag = 'scoped memory for tpu_custom_call.1']
    #allocation5 [shape = 'u8[1024]{0}', space=vmem, size = 0x400, scoped, tag = 'input window, operand 1, single buffered']
    #allocation6 [shape = 's32[1]{0}', space=sflag, size = 0x4, scoped, tag = 'scoped memory for tpu_custom_call.1']
    #allocation7 [shape = 'u8[4096]{0}', space=vmem, size = 0x1000, scoped, tag = 'output window, operand 0, single buffered']
    %7 = vsyncpa [#allocation3], 0
    %8 = vsyncpa [#allocation6], 0
    %9 = vsyncpa [#allocation4], 0
    // Predicated region
    $region2: #{tpu_custom_call.1} parent=1 // pred_check
      _
    $region3: #{tpu_custom_call.1} parent=1 // pred_check_branch
      %11 = sbr.rel (0) target = $region5
    $region4: #{tpu_custom_call.1} parent=1 // pred_region
      %13 = vsyncadd [#allocation3], 0
      %s15 = sshll.u32 %s0, 4
      %s16 = int_to_ptr.hbm [resolvable:$true] %s15
      %s17 = sshll.u32 [#allocation2], 4
      %s18 = int_to_ptr.vmem [resolvable:$true] %s17
      %20 = dma.hbm_to_vmem [thread:$0]  %s16, 128, %s18, [#allocation3]
    $region5: #{tpu_custom_call.1} parent=1 // pred_fallthru
      _
    // Predicated region
    $region6: #{tpu_custom_call.1} parent=1 // pred_check
      _
    $region7: #{tpu_custom_call.1} parent=1 // pred_check_branch
      %22 = sbr.rel (0) target = $region9
    $region8: #{tpu_custom_call.1} parent=1 // pred_region
      %24 = vsyncadd [#allocation6], 0
      %s26 = sshll.u32 %s1, 4
      %s27 = int_to_ptr.hbm [resolvable:$true] %s26
      %s28 = sshll.u32 [#allocation5], 4
      %s29 = int_to_ptr.vmem [resolvable:$true] %s28
      %31 = dma.hbm_to_vmem [thread:$0]  %s27, 32, %s29, [#allocation6]
    $region9: #{tpu_custom_call.1} parent=1 // pred_fallthru
      _
    // Predicated region
    $region10: #{tpu_custom_call.1} parent=1 // pred_check
      _
    $region11: #{tpu_custom_call.1} parent=1 // pred_check_branch
      %33 = sbr.rel (0) target = $region13
    $region12: #{tpu_custom_call.1} parent=1 // pred_region
      %35 = dma.done [#allocation3], 128
    $region13: #{tpu_custom_call.1} parent=1 // pred_fallthru
      _
    // Predicated region
    $region14: #{tpu_custom_call.1} parent=1 // pred_check
      _
    $region15: #{tpu_custom_call.1} parent=1 // pred_check_branch
      %37 = sbr.rel (0) target = $region17
    $region16: #{tpu_custom_call.1} parent=1 // pred_region
      %39 = dma.done [#allocation6], 32
    $region17: #{tpu_custom_call.1} parent=1 // pred_fallthru
      _
    %v42 = vld [vmem:[#allocation2] sm:$0xff]
    %v43 = vld [vmem:[#allocation5] sm:$0x3]
    %vm44 = vnez %v43
    %v45 = vlaneseq
    %v46 = vand.u32 %v45, 127
    %vm47 = vcmp.gt.s32.totalorder %v46, 0
    %vm48 = vmpackc.low %vm47, %vm47
    %v49 = vsel %vm48, 16711935, 0
    %v50 = vsel %vm48, 16711935, 0
    %v51 = vpack.c.b8 %v50, %v49
    %vm52 = vnez %v51
    %vm53 = vmand %vm44, %vm52
    %v54 = vsel %vm53, 16843009, 0
    %v55 = vunpack.c.0.s8 %v54
    %vm56 = vcmp.ne.s32.totalorder %v55, 0
    %v57 = vsel %vm56, 1, 0
    %58 = vrot.lane.b32.xlu0 %v42, 1
    %v59 = vpop.permute.xlu0 %58
    %60 = vrot.lane.b32.xlu0 %v57, 1
    %v61 = vpop.permute.xlu0 %60
    %v62 = vsel %vm56, %v59, %v42
    %v63 = vmul.u32 %v57, %v61
    %64 = vrot.lane.b32.xlu0 %v62, 2
    %v65 = vpop.permute.xlu0 %64
    %66 = vrot.lane.b32.xlu0 %v63, 2
    %v67 = vpop.permute.xlu0 %66
    %vm68 = vcmp.ne.s32.totalorder %v63, 0
    %v69 = vsel %vm68, %v65, %v62
    %v70 = vmul.u32 %v63, %v67
    %71 = vrot.lane.b32.xlu0 %v69, 4
    %v72 = vpop.permute.xlu0 %71
    %73 = vrot.lane.b32.xlu0 %v70, 4
    %v74 = vpop.permute.xlu0 %73
    %vm75 = vcmp.ne.s32.totalorder %v70, 0
    %v76 = vsel %vm75, %v72, %v69
    %v77 = vmul.u32 %v70, %v74
    %78 = vrot.lane.b32.xlu0 %v76, 8
    %v79 = vpop.permute.xlu0 %78
    %80 = vrot.lane.b32.xlu0 %v77, 8
    %v81 = vpop.permute.xlu0 %80
    %vm82 = vcmp.ne.s32.totalorder %v77, 0
    %v83 = vsel %vm82, %v79, %v76
    %v84 = vmul.u32 %v77, %v81
    %85 = vrot.lane.b32.xlu0 %v83, 16
    %v86 = vpop.permute.xlu0 %85
    %87 = vrot.lane.b32.xlu0 %v84, 16
    %v88 = vpop.permute.xlu0 %87
    %vm89 = vcmp.ne.s32.totalorder %v84, 0
    %v90 = vsel %vm89, %v86, %v83
    %v91 = vmul.u32 %v84, %v88
    %92 = vrot.lane.b32.xlu0 %v90, 32
    %v93 = vpop.permute.xlu0 %92
    %94 = vrot.lane.b32.xlu0 %v91, 32
    %v95 = vpop.permute.xlu0 %94
    %vm96 = vcmp.ne.s32.totalorder %v91, 0
    %v97 = vsel %vm96, %v93, %v90
    %v98 = vmul.u32 %v91, %v95
    %99 = vrot.lane.b32.xlu0 %v97, 64
    %v100 = vpop.permute.xlu0 %99
    %vm101 = vcmp.ne.s32.totalorder %v98, 0
    %v102 = vsel %vm101, %v100, %v97
    %103 = vst [vmem:[#allocation7] sm:$0xff] %v102
    // Predicated region
    $region18: #{tpu_custom_call.1} parent=1 // pred_check
      _
    $region19: #{tpu_custom_call.1} parent=1 // pred_check_branch
      %105 = sbr.rel (0) target = $region21
    $region20: #{tpu_custom_call.1} parent=1 // pred_region
      %107 = vsyncadd [#allocation4], 0
      %s109 = sshll.u32 [#allocation7], 4
      %s110 = int_to_ptr.vmem [resolvable:$true] %s109
      %s111 = sshll.u32 %s2, 4
      %s112 = int_to_ptr.hbm [resolvable:$true] %s111
      %114 = dma.vmem_to_hbm [thread:$0]  %s110, 128, %s112, [#allocation4]
    $region21: #{tpu_custom_call.1} parent=1 // pred_fallthru
      _
    // Predicated region
    $region22: #{tpu_custom_call.1} parent=1 // pred_check
      _
    $region23: #{tpu_custom_call.1} parent=1 // pred_check_branch
      %116 = sbr.rel (0) target = $region25
    $region24: #{tpu_custom_call.1} parent=1 // pred_region
      %118 = dma.done [#allocation4], 128
    $region25: #{tpu_custom_call.1} parent=1 // pred_fallthru
      _
    %119 = vsyncpa [#allocation3], 1
    %120 = vsyncpa [#allocation6], 1
    %121 = vsyncpa [#allocation4], 1

</llo_original>
